<compile_context>
chip_gen: v5e
topology: v5e:2x2
jax: 0.10.0
libtpu: 0.0.40
codegen_flags: <defaults>
</compile_context>

<pallas_src>
import functools
import numpy as np
import jax
import jax.numpy as jnp
from jax.experimental import pallas as pl
from jax.experimental.pallas import tpu as pltpu


def _const_idx(nd):
    return lambda i: (0,) * nd


def _divisor_leq(n, target):
    """Largest divisor of n that is <= target (for leading/batch block dims)."""
    t = max(1, min(n, target))
    for d in range(t, 0, -1):
        if n % d == 0:
            return d
    return 1


def _row_tile(n, target):
    """Row block for 2-D blocked arrays: full extent or a multiple-of-8 divisor."""
    if n <= target:
        return n
    for d in range(min(n, target), 7, -1):
        if n % d == 0 and d % 8 == 0:
            return d
    return n


def _parallel():
    return pltpu.CompilerParams(dimension_semantics=("parallel",))


# ----------------------------- in-kernel helpers -----------------------------

def _bf16(x):
    return x.astype(jnp.bfloat16)


def _gelu(x):
    # tanh-approx GELU: exp/tanh go to the EUP slot (review item).
    c = 0.7978845608028654  # sqrt(2/pi)
    return 0.5 * x * (1.0 + jnp.tanh(c * (x + 0.044715 * x * x * x)))


def _ln(x, g, b, eps=1e-5):
    mu = jnp.mean(x, axis=-1, keepdims=True)
    xc = x - mu
    var = jnp.mean(xc * xc, axis=-1, keepdims=True)
    return xc * jax.lax.rsqrt(var + eps) * g + b


# ------------------------------ Pallas kernels -------------------------------

def _linear_kernel(x_ref, w_ref, b_ref, o_ref, *, act):
    y = jnp.dot(_bf16(x_ref[...]), _bf16(w_ref[...]),
                preferred_element_type=jnp.float32) + b_ref[...]
    if act:
        y = _gelu(y)
    o_ref[...] = y


def _embed_kernel(x_ref, w_ref, pos_ref, o_ref):
    # fused: non-stationary instance norm over time + circular 3-tap token conv
    # (time rolls via slice+concat, one [3C, D] matmul) + positional embedding.
    x = x_ref[...]                                        # [bb, T, C]
    bb, T, C = x.shape
    D = w_ref.shape[-1]
    mu = jnp.mean(x, axis=1, keepdims=True)
    xc = x - mu
    var = jnp.mean(xc * xc, axis=1, keepdims=True)
    xn = xc * jax.lax.rsqrt(var + 1e-5)
    x_prev = jnp.concatenate([xn[:, T - 1:, :], xn[:, :T - 1, :]], axis=1)
    x_next = jnp.concatenate([xn[:, 1:, :], xn[:, :1, :]], axis=1)
    xcat = jnp.concatenate([x_prev, xn, x_next], axis=-1)  # [bb, T, 3C]
    tok = jnp.dot(_bf16(xcat.reshape(bb * T, 3 * C)), _bf16(w_ref[...]),
                  preferred_element_type=jnp.float32)
    o_ref[...] = tok.reshape(bb, T, D) + pos_ref[...]


def _attention_block_kernel(x_ref, wqkv_ref, bqkv_ref, wo_ref, bo_ref,
                            w1_ref, b1_ref, w2_ref, b2_ref,
                            n1g_ref, n1b_ref, n2g_ref, n2b_ref,
                            scg_ref, scb_ref, o_ref, *, n_heads):
    # Entire Attention_Block (fused QKV, per-head SDPA, out-proj, residual, LN1,
    # FFN, residual, LN2) + ScaleGraphBlock's norm + GELU in one kernel.
    x = x_ref[...]                                        # [bb, L, D]
    bb, L, D = x.shape
    H = n_heads
    E = D // H
    R = bb * L
    scale = 1.0 / (float(E) ** 0.5)

    x2 = x.reshape(R, D)
    qkv = jnp.dot(_bf16(x2), _bf16(wqkv_ref[...]),
                  preferred_element_type=jnp.float32) + bqkv_ref[...]
    qkv3 = qkv.reshape(bb, L, 3 * D)

    heads = []
    for h in range(H):
        qh = qkv3[:, :, h * E:(h + 1) * E]
        kh = qkv3[:, :, D + h * E:D + (h + 1) * E]
        vh = qkv3[:, :, 2 * D + h * E:2 * D + (h + 1) * E]
        s = jnp.einsum('ble,bse->bls', _bf16(qh * scale), _bf16(kh),
                       preferred_element_type=jnp.float32)
        s = s - jnp.max(s, axis=-1, keepdims=True)
        p = jnp.exp(s)
        p = p * pl.reciprocal(jnp.sum(p, axis=-1, keepdims=True), approx=True)
        heads.append(jnp.einsum('bls,bse->ble', _bf16(p), _bf16(vh),
                                preferred_element_type=jnp.float32))
    ho = jnp.concatenate(heads, axis=-1).reshape(R, D)

    attn = jnp.dot(_bf16(ho), _bf16(wo_ref[...]),
                   preferred_element_type=jnp.float32) + bo_ref[...]
    x1 = _ln(x2 + attn, n1g_ref[...], n1b_ref[...])
    y = jnp.dot(_bf16(x1), _bf16(w1_ref[...]),
                preferred_element_type=jnp.float32) + b1_ref[...]
    y = _gelu(y)
    y = jnp.dot(_bf16(y), _bf16(w2_ref[...]),
                preferred_element_type=jnp.float32) + b2_ref[...]
    x2o = _ln(x1 + y, n2g_ref[...], n2b_ref[...])
    # ScaleGraphBlock: self.norm(...) then GELU, fused here.
    out = _gelu(_ln(x2o, scg_ref[...], scb_ref[...]))
    o_ref[...] = out.reshape(bb, L, D)


def _graph_out_kernel(eon_ref, x_ref, wlin_ref, blin_ref, g_ref, b_ref, o_ref):
    # final node -> d_model linear + residual + LayerNorm fused.
    add = jnp.dot(_bf16(eon_ref[...]), _bf16(wlin_ref[...]),
                  preferred_element_type=jnp.float32) + blin_ref[...]
    o_ref[...] = _ln(x_ref[...] + add, g_ref[...], b_ref[...])


def _combine_kernel(res_ref, sw_ref, x_ref, g_ref, b_ref, o_ref):
    # softmax-weighted multi-scale combine + residual + model-level LayerNorm
    # (softmax itself is exact, done in the jitted wrapper).
    sw = sw_ref[...]                                      # [bb, 1, K]
    acc = x_ref[...]
    for kk in range(res_ref.shape[0]):
        acc = acc + res_ref[kk] * sw[:, :, kk][:, :, None]
    o_ref[...] = _ln(acc, g_ref[...], b_ref[...])


# ------------------------------ kernel wrappers -------------------------------

def _linear(x2d, w, b2d, act=False, row_target=1024):
    R, Kd = x2d.shape
    N = w.shape[1]
    rb = _row_tile(R, row_target)
    wb = w.astype(jnp.bfloat16)
    kern = functools.partial(_linear_kernel, act=act)
    return pl.pallas_call(
        kern,
        out_shape=jax.ShapeDtypeStruct((R, N), jnp.float32),
        grid=(R // rb,),
        in_specs=[pl.BlockSpec((rb, Kd), lambda i: (i, 0)),
                  pl.BlockSpec(wb.shape, _const_idx(2)),
                  pl.BlockSpec(b2d.shape, _const_idx(2))],
        out_specs=pl.BlockSpec((rb, N), lambda i: (i, 0)),
        compiler_params=_parallel(),
    )(x2d, wb, b2d)


def _embed(x_enc, wcat, pos):
    B, T, C = x_enc.shape
    D = wcat.shape[-1]
    bb = _divisor_leq(B, 128)
    wb = wcat.astype(jnp.bfloat16)
    return pl.pallas_call(
        _embed_kernel,
        out_shape=jax.ShapeDtypeStruct((B, T, D), jnp.float32),
        grid=(B // bb,),
        in_specs=[pl.BlockSpec((bb, T, C), lambda i: (i, 0, 0)),
                  pl.BlockSpec(wb.shape, _const_idx(2)),
                  pl.BlockSpec(pos.shape, _const_idx(3))],
        out_specs=pl.BlockSpec((bb, T, D), lambda i: (i, 0, 0)),
        compiler_params=_parallel(),
    )(x_enc, wb, pos)


def _attention_scale_block(x, ap, sc_g, sc_b, n_heads):
    Bp, L, D = x.shape
    # keep ~256 flattened rows per block so scores/FFN temps fit v5e/v7x VMEM
    bb = _divisor_leq(Bp, max(1, 256 // max(L, 1)))
    consts = (ap['wqkv'].astype(jnp.bfloat16), ap['bqkv'],
              ap['wo'].astype(jnp.bfloat16), ap['bo'],
              ap['w1'].astype(jnp.bfloat16), ap['b1'],
              ap['w2'].astype(jnp.bfloat16), ap['b2'],
              ap['n1_g'], ap['n1_b'], ap['n2_g'], ap['n2_b'],
              sc_g, sc_b)
    in_specs = [pl.BlockSpec((bb, L, D), lambda i: (i, 0, 0))]
    in_specs += [pl.BlockSpec(c.shape, _const_idx(c.ndim)) for c in consts]
    kern = functools.partial(_attention_block_kernel, n_heads=n_heads)
    return pl.pallas_call(
        kern,
        out_shape=jax.ShapeDtypeStruct((Bp, L, D), jnp.float32),
        grid=(Bp // bb,),
        in_specs=in_specs,
        out_specs=pl.BlockSpec((bb, L, D), lambda i: (i, 0, 0)),
        compiler_params=_parallel(),
    )(x, *consts)


def _graph_out(eon, x2d, wlin, blin, g, b):
    R, D = x2d.shape
    N = eon.shape[1]
    rb = _row_tile(R, 1024)
    wb = wlin.astype(jnp.bfloat16)
    consts = (wb, blin, g, b)
    in_specs = [pl.BlockSpec((rb, N), lambda i: (i, 0)),
                pl.BlockSpec((rb, D), lambda i: (i, 0))]
    in_specs += [pl.BlockSpec(c.shape, _const_idx(c.ndim)) for c in consts]
    return pl.pallas_call(
        _graph_out_kernel,
        out_shape=jax.ShapeDtypeStruct((R, D), jnp.float32),
        grid=(R // rb,),
        in_specs=in_specs,
        out_specs=pl.BlockSpec((rb, D), lambda i: (i, 0)),
        compiler_params=_parallel(),
    )(eon, x2d, *consts)


def _combine(res_t, sw3, x, g, b):
    Ksc, B, T, N = res_t.shape
    bb = _divisor_leq(B, 64)
    return pl.pallas_call(
        _combine_kernel,
        out_shape=jax.ShapeDtypeStruct((B, T, N), jnp.float32),
        grid=(B // bb,),
        in_specs=[pl.BlockSpec((Ksc, bb, T, N), lambda i: (0, i, 0, 0)),
                  pl.BlockSpec((bb, 1, sw3.shape[-1]), lambda i: (i, 0, 0)),
                  pl.BlockSpec((bb, T, N), lambda i: (i, 0, 0)),
                  pl.BlockSpec(g.shape, _const_idx(g.ndim)),
                  pl.BlockSpec(b.shape, _const_idx(b.ndim))],
        out_specs=pl.BlockSpec((bb, T, N), lambda i: (i, 0, 0)),
        compiler_params=_parallel(),
    )(res_t, sw3, x, g, b)


# --------------------------------- JAX glue ----------------------------------

def _graph_block(x, gp, *, gcn_depth, propalpha):
    B, T, D = x.shape
    N = gp['nodevec1'].shape[0]
    Kh, cc = gp['w_start'].shape
    sk = gp['w_mlp'].shape[-1]
    # start-conv folding assumptions (fail loudly if the config breaks them)
    assert Kh == D - N + 1, "start_conv fold requires Kh == d_model - n_nodes + 1"
    assert gp['w_mlp'].shape[0] == (gcn_depth + 1) * cc

    # adaptive adjacency (parameter-only, tiny)
    adj = jax.nn.softmax(jnp.maximum(gp['nodevec1'] @ gp['nodevec2'], 0.0), axis=1)
    adj = adj + jnp.eye(N, dtype=jnp.float32)
    a = adj / jnp.sum(adj, axis=1, keepdims=True)
    aT = a.T

    # fold start_conv window into [D, N, cc]
    wbig3 = jnp.stack([jnp.pad(gp['w_start'], ((n, D - Kh - n), (0, 0)))
                       for n in range(N)], axis=1)              # [D, N, cc]
    w_mlp = gp['w_mlp'].reshape(gcn_depth + 1, cc, sk)

    # fold ALL mixprop hops + per-hop MLP into one [D, N*sk] matrix (linear in x)
    eye_n = jnp.eye(N, dtype=jnp.float32)
    G = eye_n
    wfold = jnp.zeros((D, N, sk), jnp.float32)
    bfold = jnp.zeros((N, sk), jnp.float32)
    for j in range(gcn_depth + 1):
        if j > 0:
            G = propalpha * eye_n + (1.0 - propalpha) * (G @ aT)
        wfold = wfold + jnp.einsum('dnc,nm,cs->dms', wbig3, G, w_mlp[j])
        bfold = bfold + (jnp.sum(G, axis=0)[:, None]
                         * (gp['b_start'] @ w_mlp[j])[None, :])
    bfold = bfold + gp['b_mlp'][None, :]
    wfold2 = wfold.reshape(D, N * sk)
    bfold2 = bfold.reshape(1, N * sk)

    x2d = x.reshape(B * T, D)
    go = _linear(x2d, wfold2, bfold2, act=True)                  # [B*T, N*sk]

    # end_conv over (skip, time) per node, then node -> d_model linear + LN.
    # TODO(synk): the two transposes below are small XLA ops between pallas
    # calls; fusing them in-kernel needs >2-D relayouts and is left out.
    ec_in = jnp.transpose(go.reshape(B, T, N, sk), (0, 2, 3, 1)).reshape(B * N, sk * T)
    eo = _linear(ec_in, gp['w_end'], gp['b_end'])                # [B*N, T]
    eon = jnp.transpose(eo.reshape(B, N, T), (0, 2, 1)).reshape(B * T, N)
    y = _graph_out(eon, x2d, gp['w_lin'], gp['b_lin'], gp['ln_g'], gp['ln_b'])
    return y.reshape(B, T, D)


@jax.jit
def _embed_forward(x_enc, wcat, pos_full):
    T = x_enc.shape[1]
    return _embed(x_enc, wcat, pos_full[None, :T, :])


@functools.partial(jax.jit, static_argnames=('k',))
def _fft_stats(x, *, k):
    xf = jnp.fft.rfft(x, axis=1)
    amp_bf = jnp.abs(xf).mean(axis=-1)           # [B, F]
    freq = amp_bf.mean(axis=0)
    freq = freq.at[0].set(0.0)
    _, top = jax.lax.top_k(freq, k)
    return top, amp_bf


@functools.partial(jax.jit, static_argnames=(
    'periods', 'top_idx', 'seq_len', 'gcn_depth', 'propalpha', 'n_heads'))
def _scale_layer(lp, ln_g, ln_b, x, amp, *, periods, top_idx, seq_len,
                 gcn_depth, propalpha, n_heads):
    B, T, N = x.shape
    scale_weight = amp[:, list(top_idx)]         # [B, k]
    sw3 = jax.nn.softmax(scale_weight, axis=1)[:, None, :]      # exact softmax
    res = []
    for i, scale in enumerate(periods):
        x = _graph_block(x, lp['gconv'][i],
                         gcn_depth=gcn_depth, propalpha=propalpha)
        if seq_len % scale != 0:
            length = (seq_len // scale + 1) * scale
            pad = jnp.zeros((B, length - seq_len, N), jnp.float32)
            out = jnp.concatenate([x, pad], axis=1)
        else:
            length = seq_len
            out = x
        out = out.reshape(B * (length // scale), scale, N)
        out = _attention_scale_block(out, lp['att0'], lp['sc_g'], lp['sc_b'],
                                     n_heads)
        out = out.reshape(B, length, N)[:, :seq_len, :]
        res.append(out)
    res_t = jnp.stack(res, axis=0)               # [k, B, T, N]
    return _combine(res_t, sw3, x, ln_g, ln_b)


@jax.jit
def _project(enc, w, b):
    B = enc.shape[0]
    return _linear(enc.reshape(B, -1), w, b)


def model_forward(params, cfg, x_enc, x_mark_enc=None, x_dec=None,
                  x_mark_dec=None, mask=None):
    enc = _embed_forward(x_enc.astype(jnp.float32), params['emb_w'],
                         params['pos_emb'])
    for lp in params['layers']:
        # TODO(synk): the reference pulls the top-k FFT indices to host (they
        # define reshape sizes); only this tiny [k] transfer leaves the device.
        top, amp = _fft_stats(enc, k=cfg['top_k'])
        top_np = np.asarray(jax.device_get(top))
        periods = tuple(int(cfg['seq_len'] // int(t)) for t in top_np)
        top_idx = tuple(int(t) for t in top_np)
        enc = _scale_layer(lp, params['ln_g'], params['ln_b'], enc, amp,
                           periods=periods, top_idx=top_idx,
                           seq_len=cfg['seq_len'],
                           gcn_depth=cfg['gcn_depth'],
                           propalpha=cfg['propalpha'],
                           n_heads=cfg['n_heads'])
    return _project(enc, params['proj_w'], params['proj_b'])


# ---------------------------- parameter construction --------------------------

def positional_embedding(max_len, d_model):
    pe = np.zeros((max_len, d_model), dtype=np.float32)
    pos = np.arange(max_len, dtype=np.float32)[:, None]
    div = np.exp(np.arange(0, d_model, 2, dtype=np.float32)
                 * -(np.log(10000.0) / d_model))
    pe[:, 0::2] = np.sin(pos * div)
    pe[:, 1::2] = np.cos(pos * div)
    return jnp.asarray(pe)


def init_params(key, cfg):
    D, C, T = cfg['d_model'], cfg['enc_in'], cfg['seq_len']
    cc, sk, gd = cfg['conv_channel'], cfg['skip_channel'], cfg['gcn_depth']
    ff, K, L, NC = cfg['d_ff'], cfg['top_k'], cfg['e_layers'], cfg['num_class']
    H = cfg['n_heads']
    assert D % H == 0, "d_model must be divisible by n_heads"
    assert D - C + 1 >= 1, "start_conv fold needs d_model >= enc_in"
    keys = iter(jax.random.split(key, 4096))

    def w(shape, scale=0.1):
        return scale * jax.random.normal(next(keys), shape, dtype=jnp.float32)

    zeros = lambda s: jnp.zeros(s, jnp.float32)
    ones = lambda s: jnp.ones(s, jnp.float32)

    def att_params():
        # fused QKV weight [D, 3D] laid out [q_heads | k_heads | v_heads]
        return dict(wqkv=w((D, 3 * D)), bqkv=zeros((1, 3 * D)),
                    wo=w((D, D)), bo=zeros((1, D)),
                    w1=w((D, ff)), b1=zeros((1, ff)),
                    w2=w((ff, D)), b2=zeros((1, D)),
                    n1_g=ones((1, D)), n1_b=zeros((1, D)),
                    n2_g=ones((1, D)), n2_b=zeros((1, D)))

    def gconv_params():
        Kh = D - C + 1
        return dict(nodevec1=w((C, D), 1.0), nodevec2=w((D, C), 1.0),
                    w_start=w((Kh, cc)), b_start=zeros((cc,)),
                    w_mlp=w(((gd + 1) * cc, sk)), b_mlp=zeros((sk,)),
                    w_end=w((sk * T, T)), b_end=zeros((1, T)),
                    w_lin=w((C, D)), b_lin=zeros((1, D)),
                    ln_g=ones((1, D)), ln_b=zeros((1, D)))

    layers = [dict(att0=att_params(),
                   sc_g=ones((1, D)), sc_b=zeros((1, D)),
                   gconv=[gconv_params() for _ in range(K)])
              for _ in range(L)]

    return dict(emb_w=w((3 * C, D)),            # [tap*c_in, d_model]
                pos_emb=positional_embedding(5000, D),
                layers=layers,
                ln_g=ones((1, 1, D)), ln_b=zeros((1, 1, D)),
                proj_w=w((T * D, NC)), proj_b=zeros((1, NC)))


# ------------------------------------ main ------------------------------------

if __name__ == "__main__":
    cfg = dict(seq_len=8, label_len=4, pred_len=4, enc_in=4, d_model=16, d_ff=32,
               n_heads=4, top_k=2, e_layers=1, conv_channel=8, skip_channel=8,
               gcn_depth=2, propalpha=0.05, dropout=0.1, num_class=6)

    key = jax.random.PRNGKey(0)
    k_in, k_par = jax.random.split(key)
    B = 2
    x_enc = jax.random.normal(k_in, (B, cfg['seq_len'], cfg['enc_in']),
                              dtype=jnp.float32)
    # unused by this forward path (mirrors the PyTorch signature)
    x_mark_enc = jnp.zeros((B, cfg['seq_len'], 4), jnp.float32)
    x_dec = jnp.zeros((B, cfg['label_len'] + cfg['pred_len'], cfg['enc_in']),
                      jnp.float32)
    x_mark_dec = jnp.zeros((B, cfg['label_len'] + cfg['pred_len'], 4), jnp.float32)

    params = init_params(k_par, cfg)
    out = model_forward(params, cfg, x_enc, x_mark_enc, x_dec, x_mark_dec)
    out = jax.block_until_ready(out)
    assert out.shape == (B, cfg['num_class']) and out.dtype == jnp.float32
    print("KERNEL_OK")
</pallas_src>

<mosaic_0001>
module attributes {stable_mosaic.version = 11 : i64} {
  func.func @_embed_kernel(%arg0: i32, %arg1: memref<2x8x4xf32, #tpu.memory_space<vmem>>, %arg2: memref<12x16xbf16, #tpu.memory_space<vmem>>, %arg3: memref<1x8x16xf32, #tpu.memory_space<vmem>>, %arg4: memref<2x8x16xf32, #tpu.memory_space<vmem>>) attributes {dimension_semantics = [#tpu.dimension_semantics<parallel>], iteration_bounds = array<i64: 1>, scalar_prefetch = 0 : i64, scratch_operands = 0 : i64, tpu.core_type = #tpu.core_type<tc>, window_params = [{transform_indices = @transform_0, window_bounds = array<i64: 2, 8, 4>}, {pipeline_mode = #tpu.pipeline_mode<synchronous>, transform_indices = @transform_1, window_bounds = array<i64: 12, 16>}, {pipeline_mode = #tpu.pipeline_mode<synchronous>, transform_indices = @transform_2, window_bounds = array<i64: 1, 8, 16>}, {transform_indices = @transform_3, window_bounds = array<i64: 2, 8, 16>}]} {
    %c0 = arith.constant 0 : index
    %c0_0 = arith.constant 0 : index
    %c0_1 = arith.constant 0 : index
    %0 = vector.load %arg1[%c0, %c0_0, %c0_1] : memref<2x8x4xf32, #tpu.memory_space<vmem>>, vector<2x8x4xf32>
    %cst = arith.constant dense<0.000000e+00> : vector<2x4xf32>
    %1 = vector.multi_reduction <add>, %0, %cst [1] : vector<2x8x4xf32> to vector<2x4xf32>
    %2 = vector.shape_cast %1 : vector<2x4xf32> to vector<2x1x4xf32>
    %cst_2 = arith.constant 8.000000e+00 : f32
    %3 = vector.broadcast %cst_2 : f32 to vector<2x1x4xf32>
    %4 = arith.divf %2, %3 : vector<2x1x4xf32>
    %5 = vector.broadcast %4 : vector<2x1x4xf32> to vector<2x8x4xf32>
    %6 = arith.subf %0, %5 : vector<2x8x4xf32>
    %7 = arith.mulf %6, %6 : vector<2x8x4xf32>
    %cst_3 = arith.constant dense<0.000000e+00> : vector<2x4xf32>
    %8 = vector.multi_reduction <add>, %7, %cst_3 [1] : vector<2x8x4xf32> to vector<2x4xf32>
    %9 = vector.shape_cast %8 : vector<2x4xf32> to vector<2x1x4xf32>
    %cst_4 = arith.constant 8.000000e+00 : f32
    %10 = vector.broadcast %cst_4 : f32 to vector<2x1x4xf32>
    %11 = arith.divf %9, %10 : vector<2x1x4xf32>
    %cst_5 = arith.constant 9.99999974E-6 : f32
    %12 = vector.broadcast %cst_5 : f32 to vector<2x1x4xf32>
    %13 = arith.addf %11, %12 : vector<2x1x4xf32>
    %14 = math.rsqrt %13 : vector<2x1x4xf32>
    %15 = vector.broadcast %14 : vector<2x1x4xf32> to vector<2x8x4xf32>
    %16 = arith.mulf %6, %15 : vector<2x8x4xf32>
    %17 = vector.extract_strided_slice %16 {offsets = [0, 7, 0], sizes = [2, 1, 4], strides = [1, 1, 1]} : vector<2x8x4xf32> to vector<2x1x4xf32>
    %18 = vector.extract_strided_slice %16 {offsets = [0, 0, 0], sizes = [2, 7, 4], strides = [1, 1, 1]} : vector<2x8x4xf32> to vector<2x7x4xf32>
    %19 = tpu.concatenate %17, %18 in 1 : vector<2x1x4xf32>, vector<2x7x4xf32> -> vector<2x8x4xf32>
    %20 = vector.extract_strided_slice %16 {offsets = [0, 1, 0], sizes = [2, 7, 4], strides = [1, 1, 1]} : vector<2x8x4xf32> to vector<2x7x4xf32>
    %21 = vector.extract_strided_slice %16 {offsets = [0, 0, 0], sizes = [2, 1, 4], strides = [1, 1, 1]} : vector<2x8x4xf32> to vector<2x1x4xf32>
    %22 = tpu.concatenate %20, %21 in 1 : vector<2x7x4xf32>, vector<2x1x4xf32> -> vector<2x8x4xf32>
    %23 = tpu.concatenate %19, %16, %22 in 2 : vector<2x8x4xf32>, vector<2x8x4xf32>, vector<2x8x4xf32> -> vector<2x8x12xf32>
    %24 = vector.shape_cast %23 : vector<2x8x12xf32> to vector<16x12xf32>
    %25 = arith.truncf %24 : vector<16x12xf32> to vector<16x12xbf16>
    %c0_6 = arith.constant 0 : index
    %c0_7 = arith.constant 0 : index
    %26 = vector.load %arg2[%c0_6, %c0_7] : memref<12x16xbf16, #tpu.memory_space<vmem>>, vector<12x16xbf16>
    %cst_8 = arith.constant dense<0.000000e+00> : vector<16x16xf32>
    %27 = tpu.matmul %25, %26, %cst_8 {dimension_numbers = #tpu.dot_dimension_numbers<[1], [0], [0], [1], [0, 0, 1, 1], [], []>} : vector<16x12xbf16>, vector<12x16xbf16>, vector<16x16xf32> -> vector<16x16xf32>
    %28 = vector.shape_cast %27 : vector<16x16xf32> to vector<2x8x16xf32>
    %c0_9 = arith.constant 0 : index
    %c0_10 = arith.constant 0 : index
    %c0_11 = arith.constant 0 : index
    %29 = vector.load %arg3[%c0_9, %c0_10, %c0_11] : memref<1x8x16xf32, #tpu.memory_space<vmem>>, vector<1x8x16xf32>
    %30 = vector.broadcast %29 : vector<1x8x16xf32> to vector<2x8x16xf32>
    %31 = arith.addf %28, %30 : vector<2x8x16xf32>
    %c0_12 = arith.constant 0 : index
    %c0_13 = arith.constant 0 : index
    %c0_14 = arith.constant 0 : index
    %32 = vector.load %arg4[%c0_12, %c0_13, %c0_14] : memref<2x8x16xf32, #tpu.memory_space<vmem>>, vector<2x8x16xf32>
    tpu.vector_store %arg4[%c0_12, %c0_13, %c0_14], %31 {strides = array<i32>} : memref<2x8x16xf32, #tpu.memory_space<vmem>>, vector<2x8x16xf32>,
    return
  }
  func.func @transform_0(%arg0: i32) -> (i32, i32, i32) {
    %c0_i32 = arith.constant 0 : i32
    %c0_i32_0 = arith.constant 0 : i32
    %c0_i32_1 = arith.constant 0 : i32
    return %arg0, %c0_i32, %c0_i32_0 : i32, i32, i32
  }
  func.func @transform_1(%arg0: i32) -> (i32, i32) {
    %c0_i32 = arith.constant 0 : i32
    %c0_i32_0 = arith.constant 0 : i32
    %c0_i32_1 = arith.constant 0 : i32
    return %c0_i32, %c0_i32_0 : i32, i32
  }
  func.func @transform_2(%arg0: i32) -> (i32, i32, i32) {
    %c0_i32 = arith.constant 0 : i32
    %c0_i32_0 = arith.constant 0 : i32
    %c0_i32_1 = arith.constant 0 : i32
    %c0_i32_2 = arith.constant 0 : i32
    return %c0_i32, %c0_i32_0, %c0_i32_1 : i32, i32, i32
  }
  func.func @transform_3(%arg0: i32) -> (i32, i32, i32) {
    %c0_i32 = arith.constant 0 : i32
    %c0_i32_0 = arith.constant 0 : i32
    %c0_i32_1 = arith.constant 0 : i32
    return %arg0, %c0_i32, %c0_i32_0 : i32, i32, i32
  }
}

</mosaic_0001>

<llo_original>
// kernel: _embed_forward.1
$region0: #{_embed_forward.1}
  #allocation0 [shape = 'u32[]', space=smem, size = 0x4, offset = 0x4, fixed_abs, tag = 'smem constant byte address 0x4 - core index']
  #allocation1 [shape = 'u32[72,128]{1,0:T(1,128)}', space=vmem, size = 0x9000, scoped, tag = 'internal scratch']
  %s0 = inlined_call_operand.vmem [shape: f32[2,8,4], index: 0, kind: input, shape index: {}]
  %s1 = inlined_call_operand.vmem [shape: bf16[12,16], index: 1, kind: input, shape index: {}]
  %s2 = inlined_call_operand.vmem [shape: f32[1,8,16], index: 2, kind: input, shape index: {}]
  %s3 = inlined_call_operand.hbm [shape: f32[2,8,16], index: 3, kind: output, shape index: {}]
  %s4 = sld [smem:[#allocation0]]
  $region22: #{_embed_forward.1} parent=0
    _
  %s6 = ssub.s32 1, %s4
  %s7 = scalar_select 0, %s6, %s4
  $region1: #{_embed_forward.1} parent=0
    #allocation2 [shape = 'u8[8192]{0}', space=vmem, size = 0x2000, scoped, tag = 'output window, operand 0, single buffered']
    #allocation3 [shape = 's32[1]{0}', space=sflag, size = 0x4, scoped, tag = 'scoped memory for _embed_forward.1']
    %8 = vsyncpa [#allocation3], 0
    // Predicated region
    $region2: #{_embed_forward.1} parent=1 // pred_check
      _
    $region3: #{_embed_forward.1} parent=1 // pred_check_branch
      %10 = sbr.rel (0) target = $region5
    $region4: #{_embed_forward.1} parent=1 // pred_region
      _
    $region5: #{_embed_forward.1} parent=1 // pred_fallthru
      _
    // Predicated region
    $region6: #{_embed_forward.1} parent=1 // pred_check
      _
    $region7: #{_embed_forward.1} parent=1 // pred_check_branch
      %12 = sbr.rel (0) target = $region9
    $region8: #{_embed_forward.1} parent=1 // pred_region
      _
    $region9: #{_embed_forward.1} parent=1 // pred_fallthru
      _
    // Predicated region
    $region10: #{_embed_forward.1} parent=1 // pred_check
      _
    $region11: #{_embed_forward.1} parent=1 // pred_check_branch
      %14 = sbr.rel (0) target = $region13
    $region12: #{_embed_forward.1} parent=1 // pred_region
      _
    $region13: #{_embed_forward.1} parent=1 // pred_fallthru
      _
    %v16 = vld [vmem:[%s0] sm:$0xff]
    %v17 = vld [vmem:[%s0 + $0x8] sm:$0xff]
    %vm18 = vcmask 31744
    %v19 = vsel %vm18, %v16, 0.0
    %v20 = vrot.slane %v19, 4
    %v21 = vadd.f32 %v19, %v20
    %v22 = vrot.slane %v21, 2
    %v23 = vadd.f32 %v21, %v22
    %v24 = vrot.slane %v23, 1
    %v25 = vadd.f32 %v23, %v24
    %v26 = vsel %vm18, %v17, 0.0
    %v27 = vrot.slane %v26, 4
    %v28 = vadd.f32 %v26, %v27
    %v29 = vrot.slane %v28, 2
    %v30 = vadd.f32 %v28, %v29
    %v31 = vrot.slane %v30, 1
    %v32 = vadd.f32 %v30, %v31
    %v33 = vrcp.pop 8.0
    %v34 = vmul.f32 8.0, %v33
    %v35 = vsub.f32 1.0, %v34
    %v36 = vmul.f32 %v33, %v35
    %v37 = vadd.f32 %v33, %v36
    %vm38 = vweird.f32 %v33
    %v39 = vsel %vm38, %v33, %v37
    %v40 = vmul.f32 %v25, %v39
    %v41 = vmul.f32 %v32, %v39
    %v42 = vsub.f32 %v16, %v40
    %v43 = vsub.f32 %v17, %v41
    %v44 = vmul.f32 %v42, %v42
    %v45 = vmul.f32 %v43, %v43
    %v46 = vsel %vm18, %v44, 0.0
    %v47 = vrot.slane %v46, 4
    %v48 = vadd.f32 %v46, %v47
    %v49 = vrot.slane %v48, 2
    %v50 = vadd.f32 %v48, %v49
    %v51 = vrot.slane %v50, 1
    %v52 = vadd.f32 %v50, %v51
    %v53 = vsel %vm18, %v45, 0.0
    %v54 = vrot.slane %v53, 4
    %v55 = vadd.f32 %v53, %v54
    %v56 = vrot.slane %v55, 2
    %v57 = vadd.f32 %v55, %v56
    %v58 = vrot.slane %v57, 1
    %v59 = vadd.f32 %v57, %v58
    %v60 = vmul.f32 %v52, %v39
    %v61 = vmul.f32 %v59, %v39
    %v62 = vadd.f32 %v60, 1e-05
    %v63 = vadd.f32 %v61, 1e-05
    %v64 = vrsqrt.pop %v62
    %v65 = vmul.f32 %v64, %v62
    %v66 = vmul.f32 %v65, %v64
    %v67 = vmul.f32 0.5, %v66
    %v68 = vsub.f32 1.5, %v67
    %v69 = vmul.f32 %v64, %v68
    %vm70 = vweird.f32 %v62
    %vm71 = vweird.f32 %v64
    %vm72 = vmor %vm70, %vm71
    %v73 = vsel %vm72, %v64, %v69
    %v74 = vrsqrt.pop %v63
    %v75 = vmul.f32 %v74, %v63
    %v76 = vmul.f32 %v75, %v74
    %v77 = vmul.f32 0.5, %v76
    %v78 = vsub.f32 1.5, %v77
    %v79 = vmul.f32 %v74, %v78
    %vm80 = vweird.f32 %v63
    %vm81 = vweird.f32 %v74
    %vm82 = vmor %vm80, %vm81
    %v83 = vsel %vm82, %v74, %v79
    %v84 = vmul.f32 %v42, %v73
    %v85 = vmul.f32 %v43, %v83
    %v88 = vrot.slane %v84, 7
    %v89 = vrot.slane %v85, 7
    %vm92 = vcmask 1040384
    %v93 = vsel %vm92, %v88, %v88
    %v94 = vsel %vm92, %v89, %v89
    %v95 = vrot.slane %v84, 1
    %v96 = vrot.slane %v85, 1
    %vm99 = vcmask 1046528
    %v100 = vsel %vm99, %v95, %v95
    %v101 = vsel %vm99, %v96, %v96
    %102 = vrot.lane.b32.xlu0 %v84, 4
    %v103 = vpop.permute.xlu0 %102
    %104 = vrot.lane.b32.xlu0 %v85, 4
    %v105 = vpop.permute.xlu0 %104
    %110 = vrot.lane.b32.xlu0 %v100, 8
    %v111 = vpop.permute.xlu0 %110
    %112 = vrot.lane.b32.xlu0 %v101, 8
    %v113 = vpop.permute.xlu0 %112
    %v116 = vsel %vm18, %v93, %v103
    %v117 = vsel %vm18, %v94, %v105
    %vm118 = vcmask 64512
    %v119 = vsel %vm118, %v116, %v111
    %v120 = vsel %vm118, %v117, %v113
    %v121 = vpack.c.bf16 %v120, %v119
    %v122 = vld [vmem:[%s1] sm:$0xf]
    %v123 = vld [vmem:[%s1 + $0x4] sm:$0x3]
    %v126 = vunpack.c.l.b16 %v122
    %v127 = vunpack.c.l.b16 %v123
    %v128 = vpack.c.b16 %v127, %v126
    %vm129 = vcmask 97280
    %v131 = vsel %vm129, %v121, 0
    %vm133 = vcmask 1045504
    %v135 = vsel %vm133, %v128, 0
    %137 = vmatpush.bf16.msra.mxu0 0
    %138 = vmatpush.bf16.msra.mxu0 0
    %139 = vmatpush.bf16.msra.mxu0 0
    %140 = vmatpush.bf16.msra.mxu0 0
    %141 = vmatpush.bf16.msra.mxu0 0
    %142 = vmatpush.bf16.msra.mxu0 0
    %143 = vmatpush.bf16.msra.mxu0 0
    %144 = vmatpush.bf16.msra.mxu0 %v135
    %145 = vmatmul.bf16.gmra.mxu0 %v131
    %v146 = vpop.f32.mrf.mxu0
    %v147 = vadd.f32 0.0, %v146
    %v148 = vpop.f32.mrf.mxu0
    %v149 = vadd.f32 0.0, %v148
    %150 = vdwg.mxu0
    %v151 = vld [vmem:[%s2] sm:$0xff]
    %v152 = vadd.f32 %v147, %v151
    %v153 = vadd.f32 %v149, %v151
    %vm154 = vcmask 130048
    %155 = vst.msk [vmem:[#allocation2] sm:$0xff] %vm154, %v152
    %156 = vst.msk [vmem:[#allocation2 + $0x8] sm:$0xff] %vm154, %v153
    // Predicated region
    $region14: #{_embed_forward.1} parent=1 // pred_check
      _
    $region15: #{_embed_forward.1} parent=1 // pred_check_branch
      %158 = sbr.rel (0) target = $region17
    $region16: #{_embed_forward.1} parent=1 // pred_region
      %160 = vsyncadd [#allocation3], 0
      %s161 = sshll.u32 [#allocation2], 4
      %s162 = int_to_ptr.vmem [resolvable:$true] %s161
      %s163 = sshll.u32 %s3, 4
      %s164 = int_to_ptr.hbm [resolvable:$true] %s163
      %169 = dma.vmem_to_hbm [thread:$0]  %s162, 256, %s164, [#allocation3], 128, 128, 8
    $region17: #{_embed_forward.1} parent=1 // pred_fallthru
      _
    // Predicated region
    $region18: #{_embed_forward.1} parent=1 // pred_check
      _
    $region19: #{_embed_forward.1} parent=1 // pred_check_branch
      %171 = sbr.rel (0) target = $region21
    $region20: #{_embed_forward.1} parent=1 // pred_region
      %173 = dma.done [#allocation3], 256
    $region21: #{_embed_forward.1} parent=1 // pred_fallthru
      _
    %174 = vsyncpa [#allocation3], 1

</llo_original>
